<compile_context>
chip_gen: v7x
topology: tpu7x:2x2x1
jax: 0.10.0
libtpu: 0.0.40
codegen_flags: <defaults>
</compile_context>

<pallas_src>
import jax
import jax.numpy as jnp
import numpy as np
from jax.experimental import pallas as pl
from jax.experimental.pallas import tpu as pltpu

_LANES = 128
_DEFAULT_VMEM_BYTES = 64 * 1024 * 1024  # conservative fallback (v7x per-TC VMEM)


def _identity_kernel(x_ref, o_ref):
    # Pure passthrough: copy the VMEM input tile to the output tile unchanged.
    o_ref[...] = x_ref[...]


def _ceil_div(a, b):
    return -(-a // b)


def _round_down(x, m):
    return (x // m) * m


def _sublane_tile(itemsize: int) -> int:
    # Sub-32-bit dtypes pack along sublanes: f32 -> 8, bf16 -> 16, int8 -> 32.
    return 8 * max(1, 4 // max(1, itemsize))


def _vmem_budget_bytes():
    """(per-buffer block budget, vmem_limit_bytes) sized for the current chip."""
    try:
        cap = int(pltpu.get_tpu_info().vmem_capacity_bytes)
    except Exception:
        cap = _DEFAULT_VMEM_BYTES
    # Pallas double-buffers both the input and the output block -> 4 live
    # buffers.  ~1/8 of physical VMEM each (16 MiB v5e/v6e, 8 MiB v7x), capped.
    per_buffer = max(4 << 20, min(16 << 20, cap // 8))
    vmem_limit = int(min(cap, 4 * per_buffer + (4 << 20)))
    return per_buffer, vmem_limit


def _pick_cols_groups(num_groups: int) -> int:
    """Widest 128-lane-group count (<= 64, i.e. last dim <= 8192 elems) that
    evenly divides the flat size; falls back to 1 (last dim = 128)."""
    for g in range(min(num_groups, 64), 0, -1):
        if num_groups % g == 0:
            return g
    return 1


def _plan_2d(rows, cols, itemsize, budget):
    """Tiling plan for a lane-dense (rows, cols) slab with cols % 128 == 0."""
    sub = _sublane_tile(itemsize)
    row_bytes = cols * itemsize  # cols is a multiple of 128 -> no lane padding
    padded_total = _ceil_div(rows, sub) * sub * row_bytes

    if padded_total <= budget:
        # Whole array fits one (padded) block: single grid step, full-dim block.
        return (rows, cols), (1,), (lambda i: (0, 0)), ("arbitrary",)

    if sub * row_bytes <= budget:
        # Tile rows only; block rows are a multiple of the sublane tile so the
        # (8,128) rule holds (edge overhang is masked by Pallas).
        block_rows = max(sub, _round_down(budget // row_bytes, sub))
        grid = (pl.cdiv(rows, block_rows),)
        return (block_rows, cols), grid, (lambda i: (i, 0)), ("parallel",)

    # A single sublane-tile row-group exceeds the budget: tile columns too.
    block_cols = min(cols, max(_LANES, _round_down(budget // (sub * itemsize), _LANES)))
    block_rows = max(sub, _round_down(budget // (block_cols * itemsize), sub))
    grid = (pl.cdiv(rows, block_rows), pl.cdiv(cols, block_cols))
    return ((block_rows, block_cols), grid,
            (lambda i, j: (i, j)), ("parallel", "parallel"))


def _plan_1d(n, itemsize, budget):
    """Tiling plan for a flat array whose size is not a multiple of 128."""
    sub = _sublane_tile(itemsize)
    chunk = sub * _LANES  # full (sublane, lane) tile in elements
    padded_bytes = _ceil_div(n, chunk) * chunk * itemsize

    if padded_bytes <= budget:
        return (n,), (1,), (lambda i: (0,)), ("arbitrary",)

    block_n = max(chunk, _round_down(budget // itemsize, chunk))
    return (block_n,), (pl.cdiv(n, block_n),), (lambda i: (i,)), ("parallel",)


def _pallas_identity(view: jax.Array, plan, vmem_limit: int, donate: bool) -> jax.Array:
    block_shape, grid, index_map, sem = plan
    spec = pl.BlockSpec(block_shape, index_map)
    itemsize = view.dtype.itemsize

    return pl.pallas_call(
        _identity_kernel,
        out_shape=jax.ShapeDtypeStruct(view.shape, view.dtype),
        grid_spec=pltpu.PrefetchScalarGridSpec(
            num_scalar_prefetch=0,
            grid=grid,
            in_specs=[spec],
            out_specs=spec,
        ),
        # Aliasing without actual donation makes XLA insert a defensive copy
        # (doubling HBM traffic), so only request it when the caller donates x.
        input_output_aliases=({0: 0} if donate else {}),
        compiler_params=pltpu.CompilerParams(
            dimension_semantics=sem,
            vmem_limit_bytes=vmem_limit,
        ),
        cost_estimate=pl.CostEstimate(
            flops=0,
            transcendentals=0,
            bytes_accessed=2 * view.size * itemsize,
        ),
    )(view)


def passthrough_vqvae_forward(x: jax.Array, *, donate: bool = False) -> jax.Array:
    """Identity forward pass of PassthroughVQVAE via a single Pallas copy kernel."""
    x = jnp.asarray(x)
    if x.ndim == 0 or x.size == 0:
        # Nothing to tile; identity on scalars / empty arrays.
        return x

    itemsize = x.dtype.itemsize
    n = x.size
    budget, vmem_limit = _vmem_budget_bytes()

    if n % _LANES == 0:
        # Lane-dense 2-D view: metadata-only reshape of a contiguous array, so
        # no extra HBM traffic; full-width vld/vst inside the kernel.
        groups = _pick_cols_groups(n // _LANES)
        cols = groups * _LANES
        rows = n // cols
        view = x.reshape(rows, cols)
        plan = _plan_2d(rows, cols, itemsize, budget)
        out = _pallas_identity(view, plan, vmem_limit, donate)
        return out.reshape(x.shape)

    # Fallback: flat 1-D copy with (sublane*lane)-aligned chunks; only the
    # final partial chunk uses masked stores.
    view = x.reshape(n)
    plan = _plan_1d(n, itemsize, budget)
    out = _pallas_identity(view, plan, vmem_limit, donate)
    return out.reshape(x.shape)


class PassthroughVQVAE:
    """JAX/Pallas equivalent of the fake VQ-VAE; all methods are identity."""

    def __init__(self):
        self.latent_channels = 1  # no parameters

    def reconstruct(self, x):
        return passthrough_vqvae_forward(x)

    def decode(self, x):
        return passthrough_vqvae_forward(x)

    def forward(self, x):
        return passthrough_vqvae_forward(x)

    def __call__(self, x):
        return self.forward(x)

    def encode_stage_2_inputs(self, x):
        return passthrough_vqvae_forward(x)

    def decode_stage_2_outputs(self, x):
        return passthrough_vqvae_forward(x)

    def index_quantize(self, x):
        return passthrough_vqvae_forward(x)

    def decode_samples(self, x):
        return passthrough_vqvae_forward(x)


if __name__ == "__main__":
    key = jax.random.PRNGKey(0)
    # NCHW input consistent with a VQ-VAE-style module.
    x = jax.random.normal(key, (2, 4, 16, 16), dtype=jnp.float32)
    x_host = np.asarray(jax.device_get(x))  # reference values captured up front

    model = PassthroughVQVAE()
    y = model(x)
    y = jax.block_until_ready(y)

    assert y.shape == x_host.shape and y.dtype == x_host.dtype
    assert np.array_equal(np.asarray(jax.device_get(y)), x_host)

    # Exercise the non-multiple-of-128 fallback path as well.
    x_odd = jax.random.normal(jax.random.PRNGKey(1), (3, 5, 7), dtype=jnp.float32)
    x_odd_host = np.asarray(jax.device_get(x_odd))
    y_odd = jax.block_until_ready(model.reconstruct(x_odd))
    assert np.array_equal(np.asarray(jax.device_get(y_odd)), x_odd_host)

    print("KERNEL_OK")
</pallas_src>

<mosaic_0001>
module attributes {stable_mosaic.version = 11 : i64} {
  func.func @_identity_kernel(%arg0: i32, %arg1: memref<1x2048xf32, #tpu.memory_space<vmem>>, %arg2: memref<1x2048xf32, #tpu.memory_space<vmem>>) attributes {dimension_semantics = [#tpu.dimension_semantics<arbitrary>], iteration_bounds = array<i64: 1>, scalar_prefetch = 0 : i64, scratch_operands = 0 : i64, tpu.core_type = #tpu.core_type<tc>, window_params = [{pipeline_mode = #tpu.pipeline_mode<synchronous>, transform_indices = @transform_0, window_bounds = array<i64: 1, 2048>}, {pipeline_mode = #tpu.pipeline_mode<synchronous>, transform_indices = @transform_1, window_bounds = array<i64: 1, 2048>}]} {
    %c0 = arith.constant 0 : index
    %c0_0 = arith.constant 0 : index
    %0 = vector.load %arg1[%c0, %c0_0] : memref<1x2048xf32, #tpu.memory_space<vmem>>, vector<1x2048xf32>
    %c0_1 = arith.constant 0 : index
    %c0_2 = arith.constant 0 : index
    %1 = vector.load %arg2[%c0_1, %c0_2] : memref<1x2048xf32, #tpu.memory_space<vmem>>, vector<1x2048xf32>
    tpu.vector_store %arg2[%c0_1, %c0_2], %0 {strides = array<i32>} : memref<1x2048xf32, #tpu.memory_space<vmem>>, vector<1x2048xf32>,
    return
  }
  func.func @transform_0(%arg0: i32) -> (i32, i32) {
    %c0_i32 = arith.constant 0 : i32
    %c0_i32_0 = arith.constant 0 : i32
    %c0_i32_1 = arith.constant 0 : i32
    return %c0_i32, %c0_i32_0 : i32, i32
  }
  func.func @transform_1(%arg0: i32) -> (i32, i32) {
    %c0_i32 = arith.constant 0 : i32
    %c0_i32_0 = arith.constant 0 : i32
    %c0_i32_1 = arith.constant 0 : i32
    return %c0_i32, %c0_i32_0 : i32, i32
  }
}

</mosaic_0001>

<llo_original>
// kernel: tpu_custom_call.1
$region0: #{tpu_custom_call.1}
  #allocation0 [shape = 'u32[]', space=smem, size = 0x4, offset = 0x4, fixed_abs, tag = 'smem constant byte address 0x4 - core index']
  #allocation1 [shape = 'u32[144,128]{1,0:T(1,128)}', space=vmem, size = 0x12000, scoped, tag = 'internal scratch']
  %s0 = inlined_call_operand.hbm [shape: f32[1,2048], index: 0, kind: input, shape index: {}]
  %s1 = inlined_call_operand.hbm [shape: f32[1,2048], index: 1, kind: output, shape index: {}]
  %s2 = sld [smem:[#allocation0]]
  $region18: #{tpu_custom_call.1} parent=0
    _
  %s4 = ssub.s32 1, %s2
  %s5 = scalar_select 0, %s4, %s2
  $region1: #{tpu_custom_call.1} parent=0
    #allocation2 [shape = 'u8[8192]{0}', space=vmem, size = 0x2000, scoped, tag = 'input window, operand 0, single buffered']
    #allocation3 [shape = 's32[1]{0}', space=sflag, size = 0x4, scoped, tag = 'scoped memory for tpu_custom_call.1']
    #allocation4 [shape = 's32[1]{0}', space=sflag, size = 0x4, scoped, tag = 'scoped memory for tpu_custom_call.1']
    #allocation5 [shape = 'u8[8192]{0}', space=vmem, size = 0x2000, scoped, tag = 'output window, operand 0, single buffered']
    %6 = vsyncpa [#allocation3], 0
    %7 = vsyncpa [#allocation4], 0
    // Predicated region
    $region2: #{tpu_custom_call.1} parent=1 // pred_check
      _
    $region3: #{tpu_custom_call.1} parent=1 // pred_check_branch
      %9 = sbr.rel (0) target = $region5
    $region4: #{tpu_custom_call.1} parent=1 // pred_region
      %s11 = ssub.s32 256, 256
      %12 = vsyncadd [#allocation3], %s11
      %s14 = sshll.u32 [#allocation2], 4
      %s15 = int_to_ptr.vmem [resolvable:$true] %s14
      %17 = dma.hbm_to_vmem [thread:$0]  %s0, 256, %s15, [#allocation3]
    $region5: #{tpu_custom_call.1} parent=1 // pred_fallthru
      _
    // Predicated region
    $region6: #{tpu_custom_call.1} parent=1 // pred_check
      _
    $region7: #{tpu_custom_call.1} parent=1 // pred_check_branch
      %19 = sbr.rel (0) target = $region9
    $region8: #{tpu_custom_call.1} parent=1 // pred_region
      %20 = dma.done [#allocation3], 256
    $region9: #{tpu_custom_call.1} parent=1 // pred_fallthru
      _
    %v21 = vld [vmem:[#allocation2] sm:$0xff]
    %v22 = vld [vmem:[#allocation2 + $0x8] sm:$0xff]
    %23 = vst [vmem:[#allocation5] sm:$0xff] %v21
    %24 = vst [vmem:[#allocation5 + $0x8] sm:$0xff] %v22
    // Predicated region
    $region10: #{tpu_custom_call.1} parent=1 // pred_check
      _
    $region11: #{tpu_custom_call.1} parent=1 // pred_check_branch
      %26 = sbr.rel (0) target = $region13
    $region12: #{tpu_custom_call.1} parent=1 // pred_region
      %s28 = ssub.s32 256, 256
      %29 = vsyncadd [#allocation4], %s28
      %s31 = sshll.u32 [#allocation5], 4
      %s32 = int_to_ptr.vmem [resolvable:$true] %s31
      %34 = dma.vmem_to_hbm [thread:$0]  %s32, 256, %s1, [#allocation4]
    $region13: #{tpu_custom_call.1} parent=1 // pred_fallthru
      _
    // Predicated region
    $region14: #{tpu_custom_call.1} parent=1 // pred_check
      _
    $region15: #{tpu_custom_call.1} parent=1 // pred_check_branch
      %36 = sbr.rel (0) target = $region17
    $region16: #{tpu_custom_call.1} parent=1 // pred_region
      %37 = dma.done [#allocation4], 256
    $region17: #{tpu_custom_call.1} parent=1 // pred_fallthru
      _
    %38 = vsyncpa [#allocation3], 1
    %39 = vsyncpa [#allocation4], 1

</llo_original>
